<compile_context>
chip_gen: v5e
topology: v5e:2x2
jax: 0.10.0
libtpu: 0.0.40
codegen_flags: <defaults>
</compile_context>

<pallas_src>
import functools

import jax
import jax.numpy as jnp
from jax.experimental import pallas as pl
from jax.experimental.pallas import tpu as pltpu

LANE = 128


def _round_up(x: int, m: int) -> int:
    return ((x + m - 1) // m) * m


def _hardswish(x):
    # PyTorch nn.Hardswish: x * relu6(x + 3) / 6
    return x * jnp.clip(x + 3.0, 0.0, 6.0) * (1.0 / 6.0)


# ----------------------------------------------------------------------------
# Kernel
# ----------------------------------------------------------------------------
def qnet_twin_duel_kernel(
    s_ref,              # [TB, state_dim]         (f32 or bf16)
    w1_ref, b1_ref,     # [state_dim, mid]  bf16, [1, mid]      f32
    w2_ref, b2_ref,     # [mid, mid]        bf16, [1, mid]      f32
    wbr_ref, bbr_ref,   # [mid, 2*mid]      bf16, [1, 2*mid]    f32   (wv1 | wa1 fused)
    wf_ref, bf_ref,     # [2*mid, ACT_PAD]  bf16, [1, ACT_PAD]  f32   (dueling combine folded in)
    o_ref,              # [TB, ACT_PAD]           f32
    *,
    mxu_dtype,
):
    x = s_ref[...]

    # net_state: Linear -> ReLU -> Linear   (bf16 MXU operands, f32 accumulate)
    h = jnp.dot(x.astype(mxu_dtype), w1_ref[...],
                preferred_element_type=jnp.float32) + b1_ref[...]
    h = jnp.maximum(h, 0.0)
    t = jnp.dot(h.astype(mxu_dtype), w2_ref[...],
                preferred_element_type=jnp.float32) + b2_ref[...]

    # Fused first layer of net_val1 | net_adv1, single Hardswish pass.
    br = jnp.dot(t.astype(mxu_dtype), wbr_ref[...],
                 preferred_element_type=jnp.float32) + bbr_ref[...]
    br = _hardswish(br)                                     # [TB, 2*mid] f32

    # Final layer with the dueling combine pre-folded into (wf, bf):
    #   q = q_val - mean(q_val) + q_adv  ==  br @ wf + bf   (on true action cols)
    o_ref[...] = (jnp.dot(br.astype(mxu_dtype), wf_ref[...],
                          preferred_element_type=jnp.float32)
                  + bf_ref[...]).astype(o_ref.dtype)


# ----------------------------------------------------------------------------
# Parameter preparation (done once, outside the hot path)
# ----------------------------------------------------------------------------
def prepare_params(p, *, mxu_dtype=jnp.bfloat16):
    """Fold raw [in, out] weights into the kernel-ready fused/folded layout."""
    f32 = jnp.float32
    mid = p["w2"].shape[0]
    act = p["wv2"].shape[1]
    act_pad = _round_up(max(act, LANE), LANE)

    # Fuse first layers of the value / advantage branches: t @ [wv1 | wa1].
    w_br = jnp.concatenate([p["wv1"], p["wa1"]], axis=1)              # [mid, 2*mid]
    b_br = jnp.concatenate([p["bv1"], p["ba1"]], axis=1)              # [1, 2*mid]

    # Fold the dueling combine into the final weight/bias (done in f32, then cast):
    #   q[:, j] = sum_m vh[m]*(wv2[m,j] - mean_k wv2[m,k])
    #           + sum_m ah[m]* wa2[m,0]
    #           + (bv2[j] - mean(bv2) + ba2)
    wv2_c = p["wv2"] - jnp.mean(p["wv2"], axis=1, keepdims=True)      # [mid, act]
    wa2_b = jnp.broadcast_to(p["wa2"], (mid, act))                    # [mid, act]
    w_f = jnp.concatenate([wv2_c, wa2_b], axis=0)                     # [2*mid, act]
    b_f = p["bv2"] - jnp.mean(p["bv2"], axis=1, keepdims=True) + p["ba2"]  # [1, act]
    # Lane-dense (128-wide) output; padded columns are don't-care (sliced off).
    w_f = jnp.pad(w_f, ((0, 0), (0, act_pad - act)))                  # [2*mid, act_pad]
    b_f = jnp.pad(b_f, ((0, 0), (0, act_pad - act)))                  # [1, act_pad]

    return {
        "w1": p["w1"].astype(mxu_dtype), "b1": p["b1"].astype(f32),
        "w2": p["w2"].astype(mxu_dtype), "b2": p["b2"].astype(f32),
        "w_br": w_br.astype(mxu_dtype),  "b_br": b_br.astype(f32),
        "w_f": w_f.astype(mxu_dtype),    "b_f": b_f.astype(f32),
        "action_dim": act,               # python int
    }


# ----------------------------------------------------------------------------
# Forward wrapper
# ----------------------------------------------------------------------------
def qnet_twin_duel_forward(state, kp, *, block_b=1024, min_grid_steps=2,
                           trim_output=True):
    """state: [B, state_dim] (f32 or bf16); kp: output of prepare_params()."""
    B, state_dim = state.shape
    action_dim = kp["action_dim"]
    act_pad = kp["w_f"].shape[1]
    mxu_dtype = kp["w1"].dtype

    # Batch tile: multiple of 8, at most block_b, but capped so the grid has at
    # least `min_grid_steps` steps (v7x: 2 TensorCores split the 'parallel' axis).
    tb = _round_up(block_b, 8)
    tb = min(tb, max(8, _round_up(pl.cdiv(B, min_grid_steps), 8)))
    grid = (pl.cdiv(B, tb),)   # ragged last block handled by Pallas; no input pad

    def const_spec(shape):
        # Same block every grid step -> Mosaic keeps it VMEM-resident (no re-DMA).
        return pl.BlockSpec(shape, lambda i: (0,) * len(shape))

    weight_args = (
        kp["w1"], kp["b1"], kp["w2"], kp["b2"],
        kp["w_br"], kp["b_br"], kp["w_f"], kp["b_f"],
    )

    out = pl.pallas_call(
        functools.partial(qnet_twin_duel_kernel, mxu_dtype=mxu_dtype),
        out_shape=jax.ShapeDtypeStruct((B, act_pad), jnp.float32),
        grid_spec=pltpu.PrefetchScalarGridSpec(
            num_scalar_prefetch=0,
            grid=grid,
            in_specs=[pl.BlockSpec((tb, state_dim), lambda i: (i, 0))]
                     + [const_spec(w.shape) for w in weight_args],
            # Lane-dense 128-wide output -> unmasked vst stores.
            # TODO(synk): on v5e, if profiling shows exposed output writeback,
            # add pipeline_mode=pl.Buffered(3) to this out_spec.
            out_specs=pl.BlockSpec((tb, act_pad), lambda i: (i, 0)),
        ),
        compiler_params=pltpu.CompilerParams(
            dimension_semantics=("parallel",),      # megacore / v7x 2-TC split
            vmem_limit_bytes=32 * 1024 * 1024,      # safe on v7x (64 MiB physical)
        ),
    )(state, *weight_args)

    if trim_output:
        return out[:, :action_dim]
    return out   # padded [B, 128] buffer; cols >= action_dim are don't-care


# ----------------------------------------------------------------------------
# Synthetic parameters + pure-JAX references for validation
# ----------------------------------------------------------------------------
def init_params(key, state_dim, mid_dim, action_dim):
    """Deterministic synthetic parameters. Weights are [in_dim, out_dim], f32."""
    keys = jax.random.split(key, 12)

    def w(k, shape):
        return jax.random.normal(k, shape, dtype=jnp.float32) * 0.1

    return {
        # net_state (build_mlp with num_layer-1 = 2 layers)
        "w1": w(keys[0], (state_dim, mid_dim)),   "b1": w(keys[1], (1, mid_dim)),
        "w2": w(keys[2], (mid_dim, mid_dim)),     "b2": w(keys[3], (1, mid_dim)),
        # net_val1
        "wv1": w(keys[4], (mid_dim, mid_dim)),    "bv1": w(keys[5], (1, mid_dim)),
        "wv2": w(keys[6], (mid_dim, action_dim)), "bv2": w(keys[7], (1, action_dim)),
        # net_adv1
        "wa1": w(keys[8], (mid_dim, mid_dim)),    "ba1": w(keys[9], (1, mid_dim)),
        "wa2": w(keys[10], (mid_dim, 1)),         "ba2": w(keys[11], (1, 1)),
    }


def reference_forward_prepared(state, kp):
    """Pure-JAX mirror of the exact kernel math on the prepared/fused params."""
    mxu = kp["w1"].dtype

    def mm(x, w):
        return jnp.dot(x.astype(mxu), w, preferred_element_type=jnp.float32)

    h = jnp.maximum(mm(state, kp["w1"]) + kp["b1"], 0.0)
    t = mm(h, kp["w2"]) + kp["b2"]
    br = _hardswish(mm(t, kp["w_br"]) + kp["b_br"])
    q = mm(br, kp["w_f"]) + kp["b_f"]
    return q[:, :kp["action_dim"]]


def reference_forward_f32(state, p):
    """Pure-f32 reference of QNetTwinDuel.forward (original PyTorch semantics)."""
    h = jnp.maximum(state @ p["w1"] + p["b1"], 0.0)
    t = h @ p["w2"] + p["b2"]
    vh = _hardswish(t @ p["wv1"] + p["bv1"])
    q_val = vh @ p["wv2"] + p["bv2"]
    ah = _hardswish(t @ p["wa1"] + p["ba1"])
    q_adv = ah @ p["wa2"] + p["ba2"]
    return q_val - q_val.mean(axis=1, keepdims=True) + q_adv


if __name__ == "__main__":
    # Small shapes consistent with the module: mid_dim=32, num_layer=3,
    # state_dim=16, action_dim=8, batch=64 (tb capped to 32 -> 2 grid steps).
    B, STATE_DIM, MID_DIM, ACTION_DIM = 64, 16, 32, 8

    key = jax.random.PRNGKey(0)
    k_state, k_params = jax.random.split(key)

    state = jax.random.normal(k_state, (B, STATE_DIM), dtype=jnp.float32)
    params = init_params(k_params, STATE_DIM, MID_DIM, ACTION_DIM)
    kparams = prepare_params(params)

    out = qnet_twin_duel_forward(state, kparams)
    out = jax.block_until_ready(out)
    assert out.shape == (B, ACTION_DIM)

    # Numerics-matched reference (same fused/folded bf16 weights, f32 accumulate).
    ref_bf16 = reference_forward_prepared(state, kparams)
    assert jnp.allclose(out, ref_bf16, atol=2e-3, rtol=2e-3), (
        "mismatch vs bf16-consistent reference, max abs err = "
        f"{float(jnp.max(jnp.abs(out - ref_bf16)))}")

    # Original full-f32 module semantics (looser: accounts for bf16 weight cast
    # and the weight-folded dueling combine).
    ref_f32 = reference_forward_f32(state, params)
    assert jnp.allclose(out, ref_f32, atol=2e-2, rtol=2e-2), (
        "mismatch vs f32 reference, max abs err = "
        f"{float(jnp.max(jnp.abs(out - ref_f32)))}")

    print("KERNEL_OK")
</pallas_src>

<mosaic_0001>
module attributes {stable_mosaic.version = 11 : i64} {
  func.func @qnet_twin_duel_kernel(%arg0: i32, %arg1: memref<32x16xf32, #tpu.memory_space<vmem>>, %arg2: memref<16x32xbf16, #tpu.memory_space<vmem>>, %arg3: memref<1x32xf32, #tpu.memory_space<vmem>>, %arg4: memref<32x32xbf16, #tpu.memory_space<vmem>>, %arg5: memref<1x32xf32, #tpu.memory_space<vmem>>, %arg6: memref<32x64xbf16, #tpu.memory_space<vmem>>, %arg7: memref<1x64xf32, #tpu.memory_space<vmem>>, %arg8: memref<64x128xbf16, #tpu.memory_space<vmem>>, %arg9: memref<1x128xf32, #tpu.memory_space<vmem>>, %arg10: memref<32x128xf32, #tpu.memory_space<vmem>>) attributes {dimension_semantics = [#tpu.dimension_semantics<parallel>], iteration_bounds = array<i64: 2>, scalar_prefetch = 0 : i64, scratch_operands = 0 : i64, tpu.core_type = #tpu.core_type<tc>, window_params = [{transform_indices = @transform_0, window_bounds = array<i64: 32, 16>}, {pipeline_mode = #tpu.pipeline_mode<synchronous>, transform_indices = @transform_1, window_bounds = array<i64: 16, 32>}, {pipeline_mode = #tpu.pipeline_mode<synchronous>, transform_indices = @transform_2, window_bounds = array<i64: 1, 32>}, {pipeline_mode = #tpu.pipeline_mode<synchronous>, transform_indices = @transform_3, window_bounds = array<i64: 32, 32>}, {pipeline_mode = #tpu.pipeline_mode<synchronous>, transform_indices = @transform_4, window_bounds = array<i64: 1, 32>}, {pipeline_mode = #tpu.pipeline_mode<synchronous>, transform_indices = @transform_5, window_bounds = array<i64: 32, 64>}, {pipeline_mode = #tpu.pipeline_mode<synchronous>, transform_indices = @transform_6, window_bounds = array<i64: 1, 64>}, {pipeline_mode = #tpu.pipeline_mode<synchronous>, transform_indices = @transform_7, window_bounds = array<i64: 64, 128>}, {pipeline_mode = #tpu.pipeline_mode<synchronous>, transform_indices = @transform_8, window_bounds = array<i64: 1, 128>}, {transform_indices = @transform_9, window_bounds = array<i64: 32, 128>}]} {
    %c0 = arith.constant 0 : index
    %c0_0 = arith.constant 0 : index
    %0 = vector.load %arg1[%c0, %c0_0] : memref<32x16xf32, #tpu.memory_space<vmem>>, vector<32x16xf32>
    %1 = arith.truncf %0 : vector<32x16xf32> to vector<32x16xbf16>
    %c0_1 = arith.constant 0 : index
    %c0_2 = arith.constant 0 : index
    %2 = vector.load %arg2[%c0_1, %c0_2] : memref<16x32xbf16, #tpu.memory_space<vmem>>, vector<16x32xbf16>
    %cst = arith.constant dense<0.000000e+00> : vector<32x32xf32>
    %3 = tpu.matmul %1, %2, %cst {dimension_numbers = #tpu.dot_dimension_numbers<[1], [0], [0], [1], [0, 0, 1, 1], [], []>} : vector<32x16xbf16>, vector<16x32xbf16>, vector<32x32xf32> -> vector<32x32xf32>
    %c0_3 = arith.constant 0 : index
    %c0_4 = arith.constant 0 : index
    %4 = vector.load %arg3[%c0_3, %c0_4] : memref<1x32xf32, #tpu.memory_space<vmem>>, vector<1x32xf32>
    %5 = vector.broadcast %4 : vector<1x32xf32> to vector<32x32xf32>
    %6 = arith.addf %3, %5 : vector<32x32xf32>
    %cst_5 = arith.constant 0.000000e+00 : f32
    %7 = vector.broadcast %cst_5 : f32 to vector<32x32xf32>
    %8 = arith.maximumf %6, %7 : vector<32x32xf32>
    %9 = arith.truncf %8 : vector<32x32xf32> to vector<32x32xbf16>
    %c0_6 = arith.constant 0 : index
    %c0_7 = arith.constant 0 : index
    %10 = vector.load %arg4[%c0_6, %c0_7] : memref<32x32xbf16, #tpu.memory_space<vmem>>, vector<32x32xbf16>
    %cst_8 = arith.constant dense<0.000000e+00> : vector<32x32xf32>
    %11 = tpu.matmul %9, %10, %cst_8 {dimension_numbers = #tpu.dot_dimension_numbers<[1], [0], [0], [1], [0, 0, 1, 1], [], []>} : vector<32x32xbf16>, vector<32x32xbf16>, vector<32x32xf32> -> vector<32x32xf32>
    %c0_9 = arith.constant 0 : index
    %c0_10 = arith.constant 0 : index
    %12 = vector.load %arg5[%c0_9, %c0_10] : memref<1x32xf32, #tpu.memory_space<vmem>>, vector<1x32xf32>
    %13 = vector.broadcast %12 : vector<1x32xf32> to vector<32x32xf32>
    %14 = arith.addf %11, %13 : vector<32x32xf32>
    %15 = arith.truncf %14 : vector<32x32xf32> to vector<32x32xbf16>
    %c0_11 = arith.constant 0 : index
    %c0_12 = arith.constant 0 : index
    %16 = vector.load %arg6[%c0_11, %c0_12] : memref<32x64xbf16, #tpu.memory_space<vmem>>, vector<32x64xbf16>
    %cst_13 = arith.constant dense<0.000000e+00> : vector<32x64xf32>
    %17 = tpu.matmul %15, %16, %cst_13 {dimension_numbers = #tpu.dot_dimension_numbers<[1], [0], [0], [1], [0, 0, 1, 1], [], []>} : vector<32x32xbf16>, vector<32x64xbf16>, vector<32x64xf32> -> vector<32x64xf32>
    %c0_14 = arith.constant 0 : index
    %c0_15 = arith.constant 0 : index
    %18 = vector.load %arg7[%c0_14, %c0_15] : memref<1x64xf32, #tpu.memory_space<vmem>>, vector<1x64xf32>
    %19 = vector.broadcast %18 : vector<1x64xf32> to vector<32x64xf32>
    %20 = arith.addf %17, %19 : vector<32x64xf32>
    %cst_16 = arith.constant 3.000000e+00 : f32
    %21 = vector.broadcast %cst_16 : f32 to vector<32x64xf32>
    %22 = arith.addf %20, %21 : vector<32x64xf32>
    %cst_17 = arith.constant 0.000000e+00 : f32
    %cst_18 = arith.constant 6.000000e+00 : f32
    %23 = vector.broadcast %cst_17 : f32 to vector<32x64xf32>
    %24 = arith.maximumf %23, %22 : vector<32x64xf32>
    %25 = vector.broadcast %cst_18 : f32 to vector<32x64xf32>
    %26 = arith.minimumf %25, %24 : vector<32x64xf32>
    %27 = arith.mulf %20, %26 : vector<32x64xf32>
    %cst_19 = arith.constant 0.166666672 : f32
    %28 = vector.broadcast %cst_19 : f32 to vector<32x64xf32>
    %29 = arith.mulf %27, %28 : vector<32x64xf32>
    %30 = arith.truncf %29 : vector<32x64xf32> to vector<32x64xbf16>
    %c0_20 = arith.constant 0 : index
    %c0_21 = arith.constant 0 : index
    %31 = vector.load %arg8[%c0_20, %c0_21] : memref<64x128xbf16, #tpu.memory_space<vmem>>, vector<64x128xbf16>
    %cst_22 = arith.constant dense<0.000000e+00> : vector<32x128xf32>
    %32 = tpu.matmul %30, %31, %cst_22 {dimension_numbers = #tpu.dot_dimension_numbers<[1], [0], [0], [1], [0, 0, 1, 1], [], []>} : vector<32x64xbf16>, vector<64x128xbf16>, vector<32x128xf32> -> vector<32x128xf32>
    %c0_23 = arith.constant 0 : index
    %c0_24 = arith.constant 0 : index
    %33 = vector.load %arg9[%c0_23, %c0_24] : memref<1x128xf32, #tpu.memory_space<vmem>>, vector<1x128xf32>
    %34 = vector.broadcast %33 : vector<1x128xf32> to vector<32x128xf32>
    %35 = arith.addf %32, %34 : vector<32x128xf32>
    %c0_25 = arith.constant 0 : index
    %c0_26 = arith.constant 0 : index
    %36 = vector.load %arg10[%c0_25, %c0_26] : memref<32x128xf32, #tpu.memory_space<vmem>>, vector<32x128xf32>
    tpu.vector_store %arg10[%c0_25, %c0_26], %35 {strides = array<i32>} : memref<32x128xf32, #tpu.memory_space<vmem>>, vector<32x128xf32>,
    return
  }
  func.func @transform_0(%arg0: i32) -> (i32, i32) {
    %c0_i32 = arith.constant 0 : i32
    %c0_i32_0 = arith.constant 0 : i32
    return %arg0, %c0_i32 : i32, i32
  }
  func.func @transform_1(%arg0: i32) -> (i32, i32) {
    %c0_i32 = arith.constant 0 : i32
    %c0_i32_0 = arith.constant 0 : i32
    %c0_i32_1 = arith.constant 0 : i32
    return %c0_i32, %c0_i32_0 : i32, i32
  }
  func.func @transform_2(%arg0: i32) -> (i32, i32) {
    %c0_i32 = arith.constant 0 : i32
    %c0_i32_0 = arith.constant 0 : i32
    %c0_i32_1 = arith.constant 0 : i32
    return %c0_i32, %c0_i32_0 : i32, i32
  }
  func.func @transform_3(%arg0: i32) -> (i32, i32) {
    %c0_i32 = arith.constant 0 : i32
    %c0_i32_0 = arith.constant 0 : i32
    %c0_i32_1 = arith.constant 0 : i32
    return %c0_i32, %c0_i32_0 : i32, i32
  }
  func.func @transform_4(%arg0: i32) -> (i32, i32) {
    %c0_i32 = arith.constant 0 : i32
    %c0_i32_0 = arith.constant 0 : i32
    %c0_i32_1 = arith.constant 0 : i32
    return %c0_i32, %c0_i32_0 : i32, i32
  }
  func.func @transform_5(%arg0: i32) -> (i32, i32) {
    %c0_i32 = arith.constant 0 : i32
    %c0_i32_0 = arith.constant 0 : i32
    %c0_i32_1 = arith.constant 0 : i32
    return %c0_i32, %c0_i32_0 : i32, i32
  }
  func.func @transform_6(%arg0: i32) -> (i32, i32) {
    %c0_i32 = arith.constant 0 : i32
    %c0_i32_0 = arith.constant 0 : i32
    %c0_i32_1 = arith.constant 0 : i32
    return %c0_i32, %c0_i32_0 : i32, i32
  }
  func.func @transform_7(%arg0: i32) -> (i32, i32) {
    %c0_i32 = arith.constant 0 : i32
    %c0_i32_0 = arith.constant 0 : i32
    %c0_i32_1 = arith.constant 0 : i32
    return %c0_i32, %c0_i32_0 : i32, i32
  }
  func.func @transform_8(%arg0: i32) -> (i32, i32) {
    %c0_i32 = arith.constant 0 : i32
    %c0_i32_0 = arith.constant 0 : i32
    %c0_i32_1 = arith.constant 0 : i32
    return %c0_i32, %c0_i32_0 : i32, i32
  }
  func.func @transform_9(%arg0: i32) -> (i32, i32) {
    %c0_i32 = arith.constant 0 : i32
    %c0_i32_0 = arith.constant 0 : i32
    return %arg0, %c0_i32 : i32, i32
  }
}

</mosaic_0001>

<llo_original>
// kernel: tpu_custom_call.1
$region0: #{tpu_custom_call.1}
  #allocation0 [shape = 'u32[]', space=smem, size = 0x4, offset = 0x4, fixed_abs, tag = 'smem constant byte address 0x4 - core index']
  #allocation1 [shape = 'u32[72,128]{1,0:T(1,128)}', space=vmem, size = 0x9000, scoped, tag = 'internal scratch']
  %s0 = inlined_call_operand.vmem [shape: f32[64,16], index: 0, kind: input, shape index: {}]
  %s1 = inlined_call_operand.vmem [shape: bf16[16,32], index: 1, kind: input, shape index: {}]
  %s2 = inlined_call_operand.vmem [shape: f32[1,32], index: 2, kind: input, shape index: {}]
  %s3 = inlined_call_operand.vmem [shape: bf16[32,32], index: 3, kind: input, shape index: {}]
  %s4 = inlined_call_operand.vmem [shape: f32[1,32], index: 4, kind: input, shape index: {}]
  %s5 = inlined_call_operand.vmem [shape: bf16[32,64], index: 5, kind: input, shape index: {}]
  %s6 = inlined_call_operand.vmem [shape: f32[1,64], index: 6, kind: input, shape index: {}]
  %s7 = inlined_call_operand.vmem [shape: bf16[64,128], index: 7, kind: input, shape index: {}]
  %s8 = inlined_call_operand.vmem [shape: f32[1,128], index: 8, kind: input, shape index: {}]
  %s9 = inlined_call_operand.hbm [shape: f32[64,128], index: 9, kind: output, shape index: {}]
  %s10 = sld [smem:[#allocation0]]
  $region69: #{tpu_custom_call.1} parent=0
    _
  %s12 = ssub.s32 1, %s10
  %s13 = scalar_select 0, %s12, %s10
  $region1: #{tpu_custom_call.1} parent=0
    #allocation2 [shape = 'u8[32768]{0}', space=vmem, size = 0x8000, scoped, tag = 'output window, operand 0']
    #allocation3 [shape = 's32[2]{0}', space=sflag, size = 0x8, scoped, tag = 'scoped memory for tpu_custom_call.1']
    %14 = vsyncpa [#allocation3], 0
    %s15 = scalar_lea.sflag [#allocation3], 1
    %16 = vsyncpa %s15, 0
    loop: start=0, step=1, limit=4
    $region2: #{tpu_custom_call.1} parent=1 // loop_pre_header
      _
    $region3: #{tpu_custom_call.1} parent=1 // loop_header
      %s18 = sphi 0, %s22
      %p19 = scmp.ge.s32.totalorder %s18, 4
      %s28 = sphi 0, %s30
      %s31 = sphi 0, %s28
      %s32 = sphi 0, %s31
      %s48 = sphi 0, %s32
      %s52 = sphi 0, %s52
      %s54 = sphi 0, %s52
      %s55 = sphi 0, %s54
      %s69 = sphi 0, %s55
      %s73 = sphi 0, %s73
      %s75 = sphi 0, %s73
      %s76 = sphi 0, %s75
      %s90 = sphi 0, %s76
      %s94 = sphi 0, %s94
      %s96 = sphi 0, %s94
      %s97 = sphi 0, %s96
      %s111 = sphi 0, %s97
      %s115 = sphi 0, %s115
      %s117 = sphi 0, %s115
      %s118 = sphi 0, %s117
      %s132 = sphi 0, %s118
      %s136 = sphi 0, %s136
      %s138 = sphi 0, %s136
      %s139 = sphi 0, %s138
      %s153 = sphi 0, %s139
      %s157 = sphi 0, %s157
      %s159 = sphi 0, %s157
      %s160 = sphi 0, %s159
      %s174 = sphi 0, %s160
      %s178 = sphi 0, %s178
      %s180 = sphi 0, %s178
      %s181 = sphi 0, %s180
      %s195 = sphi 0, %s181
      %s199 = sphi 0, %s199
      %s201 = sphi 0, %s199
      %s202 = sphi 0, %s201
      %s216 = sphi 0, %s202
      %s222 = sphi 0, %s224
      %s225 = sphi 0, %s222
      %s226 = sphi 0, %s225
      %s242 = sphi 0, %s226
    $region4: #{tpu_custom_call.1} parent=1 // loop_header_branch
      %21 = sbr.rel (%p19) target = $region8
    $region5: #{tpu_custom_call.1} parent=1 // loop_body
      %s23 = ssub.s32 %s18, 1
      %s24 = ssub.s32 %s18, 2
      %s25 = sadd.s32 %s18, 1
      %s26 = ssub.s32 %s18, %s25
      %p27 = scmp.eq.s32.totalorder %s26, 0
      %s29 = sadd.s32 %s28, 1
      %s30 = scalar_select %p27, %s28, %s29
      %p33 = pneg %p27
      %p34 = scmp.eq.s32.totalorder %s18, 1
      %p35 = por %p33, %p34
      %p36 = scmp.ne.s32.totalorder %s28, %s31
      %p37 = scmp.eq.s32.totalorder %s18, 0
      %p38 = por %p36, %p37
      %p39 = scmp.ne.s32.totalorder %s28, %s31
      %p40 = scmp.eq.s32.totalorder %s23, 1
      %p41 = por %p39, %p40
      %p42 = scmp.ne.s32.totalorder %s31, %s32
      %p43 = scmp.eq.s32.totalorder %s23, 0
      %p44 = por %p42, %p43
      %p45 = scmp.ne.s32.totalorder %s31, %s32
      %p46 = scmp.eq.s32.totalorder %s24, 1
      %p47 = por %p45, %p46
      %p49 = scmp.ne.s32.totalorder %s32, %s48
      %p50 = scmp.eq.s32.totalorder %s24, 0
      %p51 = por %p49, %p50
      %s53 = sadd.s32 %s52, 1
      %p56 = scmp.eq.s32.totalorder %s18, 1
      %p57 = scmp.ne.s32.totalorder %s52, %s54
      %p58 = scmp.eq.s32.totalorder %s18, 0
      %p59 = por %p57, %p58
      %p60 = scmp.ne.s32.totalorder %s52, %s54
      %p61 = scmp.eq.s32.totalorder %s23, 1
      %p62 = por %p60, %p61
      %p63 = scmp.ne.s32.totalorder %s54, %s55
      %p64 = scmp.eq.s32.totalorder %s23, 0
      %p65 = por %p63, %p64
      %p66 = scmp.ne.s32.totalorder %s54, %s55
      %p67 = scmp.eq.s32.totalorder %s24, 1
      %p68 = por %p66, %p67
      %p70 = scmp.ne.s32.totalorder %s55, %s69
      %p71 = scmp.eq.s32.totalorder %s24, 0
      %p72 = por %p70, %p71
      %s74 = sadd.s32 %s73, 1
      %p77 = scmp.eq.s32.totalorder %s18, 1
      %p78 = scmp.ne.s32.totalorder %s73, %s75
      %p79 = scmp.eq.s32.totalorder %s18, 0
      %p80 = por %p78, %p79
      %p81 = scmp.ne.s32.totalorder %s73, %s75
      %p82 = scmp.eq.s32.totalorder %s23, 1
      %p83 = por %p81, %p82
      %p84 = scmp.ne.s32.totalorder %s75, %s76
      %p85 = scmp.eq.s32.totalorder %s23, 0
      %p86 = por %p84, %p85
      %p87 = scmp.ne.s32.totalorder %s75, %s76
      %p88 = scmp.eq.s32.totalorder %s24, 1
      %p89 = por %p87, %p88
      %p91 = scmp.ne.s32.totalorder %s76, %s90
      %p92 = scmp.eq.s32.totalorder %s24, 0
      %p93 = por %p91, %p92
      %s95 = sadd.s32 %s94, 1
      %p98 = scmp.eq.s32.totalorder %s18, 1
      %p99 = scmp.ne.s32.totalorder %s94, %s96
      %p100 = scmp.eq.s32.totalorder %s18, 0
      %p101 = por %p99, %p100
      %p102 = scmp.ne.s32.totalorder %s94, %s96
      %p103 = scmp.eq.s32.totalorder %s23, 1
      %p104 = por %p102, %p103
      %p105 = scmp.ne.s32.totalorder %s96, %s97
      %p106 = scmp.eq.s32.totalorder %s23, 0
      %p107 = por %p105, %p106
      %p108 = scmp.ne.s32.totalorder %s96, %s97
      %p109 = scmp.eq.s32.totalorder %s24, 1
      %p110 = por %p108, %p109
      %p112 = scmp.ne.s32.totalorder %s97, %s111
      %p113 = scmp.eq.s32.totalorder %s24, 0
      %p114 = por %p112, %p113
      %s116 = sadd.s32 %s115, 1
      %p119 = scmp.eq.s32.totalorder %s18, 1
      %p120 = scmp.ne.s32.totalorder %s115, %s117
      %p121 = scmp.eq.s32.totalorder %s18, 0
      %p122 = por %p120, %p121
      %p123 = scmp.ne.s32.totalorder %s115, %s117
      %p124 = scmp.eq.s32.totalorder %s23, 1
      %p125 = por %p123, %p124
      %p126 = scmp.ne.s32.totalorder %s117, %s118
      %p127 = scmp.eq.s32.totalorder %s23, 0
      %p128 = por %p126, %p127
      %p129 = scmp.ne.s32.totalorder %s117, %s118
      %p130 = scmp.eq.s32.totalorder %s24, 1
      %p131 = por %p129, %p130
      %p133 = scmp.ne.s32.totalorder %s118, %s132
      %p134 = scmp.eq.s32.totalorder %s24, 0
      %p135 = por %p133, %p134
      %s137 = sadd.s32 %s136, 1
      %p140 = scmp.eq.s32.totalorder %s18, 1
      %p141 = scmp.ne.s32.totalorder %s136, %s138
      %p142 = scmp.eq.s32.totalorder %s18, 0
      %p143 = por %p141, %p142
      %p144 = scmp.ne.s32.totalorder %s136, %s138
      %p145 = scmp.eq.s32.totalorder %s23, 1
      %p146 = por %p144, %p145
      %p147 = scmp.ne.s32.totalorder %s138, %s139
      %p148 = scmp.eq.s32.totalorder %s23, 0
      %p149 = por %p147, %p148
      %p150 = scmp.ne.s32.totalorder %s138, %s139
      %p151 = scmp.eq.s32.totalorder %s24, 1
      %p152 = por %p150, %p151
      %p154 = scmp.ne.s32.totalorder %s139, %s153
      %p155 = scmp.eq.s32.totalorder %s24, 0
      %p156 = por %p154, %p155
      %s158 = sadd.s32 %s157, 1
      %p161 = scmp.eq.s32.totalorder %s18, 1
      %p162 = scmp.ne.s32.totalorder %s157, %s159
      %p163 = scmp.eq.s32.totalorder %s18, 0
      %p164 = por %p162, %p163
      %p165 = scmp.ne.s32.totalorder %s157, %s159
      %p166 = scmp.eq.s32.totalorder %s23, 1
      %p167 = por %p165, %p166
      %p168 = scmp.ne.s32.totalorder %s159, %s160
      %p169 = scmp.eq.s32.totalorder %s23, 0
      %p170 = por %p168, %p169
      %p171 = scmp.ne.s32.totalorder %s159, %s160
      %p172 = scmp.eq.s32.totalorder %s24, 1
      %p173 = por %p171, %p172
      %p175 = scmp.ne.s32.totalorder %s160, %s174
      %p176 = scmp.eq.s32.totalorder %s24, 0
      %p177 = por %p175, %p176
      %s179 = sadd.s32 %s178, 1
      %p182 = scmp.eq.s32.totalorder %s18, 1
      %p183 = scmp.ne.s32.totalorder %s178, %s180
      %p184 = scmp.eq.s32.totalorder %s18, 0
      %p185 = por %p183, %p184
      %p186 = scmp.ne.s32.totalorder %s178, %s180
      %p187 = scmp.eq.s32.totalorder %s23, 1
      %p188 = por %p186, %p187
      %p189 = scmp.ne.s32.totalorder %s180, %s181
      %p190 = scmp.eq.s32.totalorder %s23, 0
      %p191 = por %p189, %p190
      %p192 = scmp.ne.s32.totalorder %s180, %s181
      %p193 = scmp.eq.s32.totalorder %s24, 1
      %p194 = por %p192, %p193
      %p196 = scmp.ne.s32.totalorder %s181, %s195
      %p197 = scmp.eq.s32.totalorder %s24, 0
      %p198 = por %p196, %p197
      %s200 = sadd.s32 %s199, 1
      %p203 = scmp.eq.s32.totalorder %s18, 1
      %p204 = scmp.ne.s32.totalorder %s199, %s201
      %p205 = scmp.eq.s32.totalorder %s18, 0
      %p206 = por %p204, %p205
      %p207 = scmp.ne.s32.totalorder %s199, %s201
      %p208 = scmp.eq.s32.totalorder %s23, 1
      %p209 = por %p207, %p208
      %p210 = scmp.ne.s32.totalorder %s201, %s202
      %p211 = scmp.eq.s32.totalorder %s23, 0
      %p212 = por %p210, %p211
      %p213 = scmp.ne.s32.totalorder %s201, %s202
      %p214 = scmp.eq.s32.totalorder %s24, 1
      %p215 = por %p213, %p214
      %p217 = scmp.ne.s32.totalorder %s202, %s216
      %p218 = scmp.eq.s32.totalorder %s24, 0
      %p219 = por %p217, %p218
      %s220 = ssub.s32 %s18, %s25
      %p221 = scmp.eq.s32.totalorder %s220, 0
      %s223 = sadd.s32 %s222, 1
      %s224 = scalar_select %p221, %s222, %s223
      %p227 = pneg %p221
      %p228 = scmp.eq.s32.totalorder %s18, 1
      %p229 = por %p227, %p228
      %p230 = scmp.ne.s32.totalorder %s222, %s225
      %p231 = scmp.eq.s32.totalorder %s18, 0
      %p232 = por %p230, %p231
      %p233 = scmp.ne.s32.totalorder %s222, %s225
      %p234 = scmp.eq.s32.totalorder %s23, 1
      %p235 = por %p233, %p234
      %p236 = scmp.ne.s32.totalorder %s225, %s226
      %p237 = scmp.eq.s32.totalorder %s23, 0
      %p238 = por %p236, %p237
      %p239 = scmp.ne.s32.totalorder %s225, %s226
      %p240 = scmp.eq.s32.totalorder %s24, 1
      %p241 = por %p239, %p240
      %p243 = scmp.ne.s32.totalorder %s226, %s242
      %p244 = scmp.eq.s32.totalorder %s24, 0
      %p245 = por %p243, %p244
      %p246 = scmp.le.s32.totalorder 1, %s18
      %p247 = scmp.lt.s32.totalorder %s18, 3
      %p248 = pnand %p246, %p247
      %p249 = pneg %p248
      // Predicated region
      $region9: #{tpu_custom_call.1} parent=5 // pred_check
        _
      $region10: #{tpu_custom_call.1} parent=5 // pred_check_branch
        %251 = sbr.rel (%p248) target = $region12
      $region11: #{tpu_custom_call.1} parent=5 // pred_region
        %s252 = ssub.s32 %s18, 1
        // Predicated region
        $region13: #{tpu_custom_call.1} parent=11 // pred_check
          %p253 = pneg %p65
        $region14: #{tpu_custom_call.1} parent=11 // pred_check_branch
          %255 = sbr.rel (%p253) target = $region16
        $region15: #{tpu_custom_call.1} parent=11 // pred_region
          _
        $region16: #{tpu_custom_call.1} parent=11 // pred_fallthru
          _
        // Predicated region
        $region17: #{tpu_custom_call.1} parent=11 // pred_check
          %p256 = pneg %p86
        $region18: #{tpu_custom_call.1} parent=11 // pred_check_branch
          %258 = sbr.rel (%p256) target = $region20
        $region19: #{tpu_custom_call.1} parent=11 // pred_region
          _
        $region20: #{tpu_custom_call.1} parent=11 // pred_fallthru
          _
        // Predicated region
        $region21: #{tpu_custom_call.1} parent=11 // pred_check
          %p259 = pneg %p107
        $region22: #{tpu_custom_call.1} parent=11 // pred_check_branch
          %261 = sbr.rel (%p259) target = $region24
        $region23: #{tpu_custom_call.1} parent=11 // pred_region
          _
        $region24: #{tpu_custom_call.1} parent=11 // pred_fallthru
          _
        // Predicated region
        $region25: #{tpu_custom_call.1} parent=11 // pred_check
          %p262 = pneg %p128
        $region26: #{tpu_custom_call.1} parent=11 // pred_check_branch
          %264 = sbr.rel (%p262) target = $region28
        $region27: #{tpu_custom_call.1} parent=11 // pred_region
          _
        $region28: #{tpu_custom_call.1} parent=11 // pred_fallthru
          _
        // Predicated region
        $region29: #{tpu_custom_call.1} parent=11 // pred_check
          %p265 = pneg %p149
        $region30: #{tpu_custom_call.1} parent=11 // pred_check_branch
          %267 = sbr.rel (%p265) target = $region32
        $region31: #{tpu_custom_call.1} parent=11 // pred_region
          _
        $region32: #{tpu_custom_call.1} parent=11 // pred_fallthru
          _
        // Predicated region
        $region33: #{tpu_custom_call.1} parent=11 // pred_check
          %p268 = pneg %p170
        $region34: #{tpu_custom_call.1} parent=11 // pred_check_branch
          %270 = sbr.rel (%p268) target = $region36
        $region35: #{tpu_custom_call.1} parent=11 // pred_region
          _
        $region36: #{tpu_custom_call.1} parent=11 // pred_fallthru
          _
        // Predicated region
        $region37: #{tpu_custom_call.1} parent=11 // pred_check
          %p271 = pneg %p191
        $region38: #{tpu_custom_call.1} parent=11 // pred_check_branch
          %273 = sbr.rel (%p271) target = $region40
        $region39: #{tpu_custom_call.1} parent=11 // pred_region
          _
        $region40: #{tpu_custom_call.1} parent=11 // pred_fallthru
          _
        // Predicated region
        $region41: #{tpu_custom_call.1} parent=11 // pred_check
          %p274 = pneg %p212
        $region42: #{tpu_custom_call.1} parent=11 // pred_check_branch
          %276 = sbr.rel (%p274) target = $region44
        $region43: #{tpu_custom_call.1} parent=11 // pred_region
          _
        $region44: #{tpu_custom_call.1} parent=11 // pred_fallthru
          _
      $region12: #{tpu_custom_call.1} parent=5 // pred_fallthru
        _
      %p277 = scmp.lt.s32.totalorder %s18, 2
      // Predicated region
      $region45: #{tpu_custom_call.1} parent=5 // pred_check
        %p278 = pneg %p277
      $region46: #{tpu_custom_call.1} parent=5 // pred_check_branch
        %280 = sbr.rel (%p278) target = $region48
      $region47: #{tpu_custom_call.1} parent=5 // pred_region
        // Predicated region
        $region49: #{tpu_custom_call.1} parent=47 // pred_check
          %p281 = pneg %p38
        $region50: #{tpu_custom_call.1} parent=47 // pred_check_branch
          %283 = sbr.rel (%p281) target = $region52
        $region51: #{tpu_custom_call.1} parent=47 // pred_region
          %s284 = smul.u32 4, %s18
          %p285 = scmp.lt.s32.totalorder %s284, 7
          %s286 = scalar_select %p285, %s284, 7
          %s287 = smul.addr %s286, 8
          %s288 = scalar_lea.vmem %s0, %s287
          %s289 = smul.u32 4, %s18
        $region52: #{tpu_custom_call.1} parent=47 // pred_fallthru
          _
      $region48: #{tpu_custom_call.1} parent=5 // pred_fallthru
        _
      %p290 = scmp.le.s32.totalorder 1, %s18
      %p291 = scmp.lt.s32.totalorder %s18, 3
      %p292 = pnand %p290, %p291
      %p293 = pneg %p292
      // Predicated region
      $region53: #{tpu_custom_call.1} parent=5 // pred_check
        _
      $region54: #{tpu_custom_call.1} parent=5 // pred_check_branch
        %295 = sbr.rel (%p292) target = $region56
      $region55: #{tpu_custom_call.1} parent=5 // pred_region
        %s296 = ssub.s32 %s18, 1
        %s297 = smul.u32 4, %s23
        %p298 = scmp.lt.s32.totalorder %s297, 7
        %s299 = scalar_select %p298, %s297, 7
        %s300 = smul.addr %s299, 8
        %s301 = scalar_lea.vmem %s0, %s300
        %p302 = pneg %p44
        %p303 = pneg %p41
        %p304 = pneg %p65
        %p305 = pneg %p62
        %p306 = pneg %p86
        %p307 = pneg %p83
        %p308 = pneg %p107
        %p309 = pneg %p104
        %p310 = pneg %p128
        %p311 = pneg %p125
        %p312 = pneg %p149
        %p313 = pneg %p146
        %p314 = pneg %p170
        %p315 = pneg %p167
        %p316 = pneg %p191
        %p317 = pneg %p188
        %p318 = pneg %p212
        %p319 = pneg %p209
        %p320 = pneg %p238
        %p321 = pneg %p235
        %s322 = sand.u32 %s225, 1
        %s323 = scalar_lea.sflag [#allocation3], %s322
        %s324 = sand.u32 %s225, 1
        %s325 = smul.addr %s324, 32
        %s326 = scalar_lea.vmem [#allocation2], %s325
        %s327 = smul.u32 4, %s23
        %p328 = scmp.lt.s32.totalorder %s327, 7
        %s329 = scalar_select %p328, %s327, 7
        %s330 = smul.addr %s329, 8
        %s331 = scalar_lea.vmem %s0, %s330
        %s332 = smul.u32 4, %s23
        %s333 = smul.u32 4, %s23
        %v335 = vld [vmem:[%s331] sm:$0xff]
        %v336 = vld [vmem:[%s331 + $0x8] sm:$0xff]
        %v337 = vld [vmem:[%s331 + $0x10] sm:$0xff]
        %v338 = vld [vmem:[%s331 + $0x18] sm:$0xff]
        %v339 = vpack.c.bf16 %v336, %v335
        %v340 = vpack.c.bf16 %v338, %v337
        %v341 = vld [vmem:[%s1] sm:$0xf]
        %v342 = vld [vmem:[%s1 + $0x4] sm:$0xf]
        %v343 = vld [vmem:[%s2] sm:$0x1]
        %v345 = vperm.slane %v343, 0
        %v349 = vunpack.c.l.b16 %v341
        %v350 = vunpack.c.l.b16 %v342
        %v351 = vpack.c.b16 %v350, %v349
        %vm353 = vcmask 130048
        %v355 = vsel %vm353, %v339, 0
        %v358 = vsel %vm353, %v340, 0
        %360 = vmatpush.bf16.msra.mxu0 0
        %361 = vmatpush.bf16.msra.mxu0 0
        %362 = vmatpush.bf16.msra.mxu0 0
        %363 = vmatpush.bf16.msra.mxu0 0
        %364 = vmatpush.bf16.msra.mxu0 0
        %365 = vmatpush.bf16.msra.mxu0 0
        %366 = vmatpush.bf16.msra.mxu0 0
        %367 = vmatpush.bf16.msra.mxu0 %v351
        %368 = vmatmul.bf16.gmra.mxu0 %v355
        %v369 = vpop.f32.mrf.mxu0
        %v370 = vadd.f32 %v345, %v369
        %v371 = vpop.f32.mrf.mxu0
        %v372 = vadd.f32 %v345, %v371
        %373 = vmatmul.bf16.gmra.mxu0 %v358
        %v374 = vpop.f32.mrf.mxu0
        %v375 = vadd.f32 %v345, %v374
        %v376 = vpop.f32.mrf.mxu0
        %v377 = vadd.f32 %v345, %v376
        %378 = vdwg.mxu0
        %v379 = vmax.f32 %v370, 0.0
        %v380 = vmax.f32 %v372, 0.0
        %v381 = vmax.f32 %v375, 0.0
        %v382 = vmax.f32 %v377, 0.0
        %v383 = vpack.c.bf16 %v380, %v379
        %v384 = vpack.c.bf16 %v382, %v381
        %v385 = vld [vmem:[%s3] sm:$0xf]
        %v386 = vld [vmem:[%s3 + $0x4] sm:$0xf]
        %v387 = vld [vmem:[%s3 + $0x8] sm:$0xf]
        %v388 = vld [vmem:[%s3 + $0xc] sm:$0xf]
        %v389 = vld [vmem:[%s4] sm:$0x1]
        %v391 = vperm.slane %v389, 0
        %v397 = vunpack.c.l.b16 %v385
        %v398 = vunpack.c.l.b16 %v386
        %v399 = vunpack.c.l.b16 %v387
        %v400 = vunpack.c.l.b16 %v388
        %v401 = vpack.c.b16 %v398, %v397
        %v402 = vpack.c.b16 %v400, %v399
        %vm405 = vcmask 261120
        %v407 = vsel %vm405, %v383, 0
        %v410 = vsel %vm405, %v384, 0
        %412 = vmatpush.bf16.msra.mxu0 0
        %413 = vmatpush.bf16.msra.mxu0 0
        %414 = vmatpush.bf16.msra.mxu0 0
        %415 = vmatpush.bf16.msra.mxu0 0
        %416 = vmatpush.bf16.msra.mxu0 0
        %417 = vmatpush.bf16.msra.mxu0 0
        %418 = vmatpush.bf16.msra.mxu0 %v402
        %419 = vmatpush.bf16.msra.mxu0 %v401
        %420 = vmatmul.bf16.gmra.mxu0 %v407
        %v421 = vpop.f32.mrf.mxu0
        %v422 = vadd.f32 %v391, %v421
        %v423 = vpop.f32.mrf.mxu0
        %v424 = vadd.f32 %v391, %v423
        %425 = vmatmul.bf16.gmra.mxu0 %v410
        %v426 = vpop.f32.mrf.mxu0
        %v427 = vadd.f32 %v391, %v426
        %v428 = vpop.f32.mrf.mxu0
        %v429 = vadd.f32 %v391, %v428
        %430 = vdwg.mxu0
        %v431 = vpack.c.bf16 %v424, %v422
        %v432 = vpack.c.bf16 %v429, %v427
        %v433 = vld [vmem:[%s5] sm:$0xf]
        %v434 = vld [vmem:[%s5 + $0x4] sm:$0xf]
        %v435 = vld [vmem:[%s5 + $0x8] sm:$0xf]
        %v436 = vld [vmem:[%s5 + $0xc] sm:$0xf]
        %v437 = vld [vmem:[%s6] sm:$0x1]
        %v439 = vperm.slane %v437, 0
        %v445 = vunpack.c.l.b16 %v433
        %v446 = vunpack.c.l.b16 %v434
        %v447 = vunpack.c.l.b16 %v435
        %v448 = vunpack.c.l.b16 %v436
        %v449 = vpack.c.b16 %v446, %v445
        %v450 = vpack.c.b16 %v448, %v447
        %v454 = vsel %vm405, %v431, 0
        %v457 = vsel %vm405, %v432, 0
        %459 = vmatpush.bf16.msra.mxu0 0
        %460 = vmatpush.bf16.msra.mxu0 0
        %461 = vmatpush.bf16.msra.mxu0 0
        %462 = vmatpush.bf16.msra.mxu0 0
        %463 = vmatpush.bf16.msra.mxu0 0
        %464 = vmatpush.bf16.msra.mxu0 0
        %465 = vmatpush.bf16.msra.mxu0 %v450
        %466 = vmatpush.bf16.msra.mxu0 %v449
        %467 = vmatmul.bf16.gmra.mxu0 %v454
        %v468 = vpop.f32.mrf.mxu0
        %v469 = vadd.f32 %v439, %v468
        %v470 = vpop.f32.mrf.mxu0
        %v471 = vadd.f32 %v439, %v470
        %472 = vmatmul.bf16.gmra.mxu0 %v457
        %v473 = vpop.f32.mrf.mxu0
        %v474 = vadd.f32 %v439, %v473
        %v475 = vpop.f32.mrf.mxu0
        %v476 = vadd.f32 %v439, %v475
        %477 = vdwg.mxu0
        %v478 = vadd.f32 %v469, 3.0
        %v479 = vadd.f32 %v471, 3.0
        %v480 = vadd.f32 %v474, 3.0
        %v481 = vadd.f32 %v476, 3.0
        %v482 = vmax.f32 %v478, 0.0
        %v483 = vmax.f32 %v479, 0.0
        %v484 = vmax.f32 %v480, 0.0
        %v485 = vmax.f32 %v481, 0.0
        %v486 = vmin.f32 %v482, 6.0
        %v487 = vmin.f32 %v483, 6.0
        %v488 = vmin.f32 %v484, 6.0
        %v489 = vmin.f32 %v485, 6.0
        %v490 = vmul.f32 %v469, %v486
        %v491 = vmul.f32 %v471, %v487
        %v492 = vmul.f32 %v474, %v488
        %v493 = vmul.f32 %v476, %v489
        %v494 = vmul.f32 %v490, 0.16666667
        %v495 = vmul.f32 %v491, 0.16666667
        %v496 = vmul.f32 %v492, 0.16666667
        %v497 = vmul.f32 %v493, 0.16666667
        %v498 = vpack.c.bf16 %v495, %v494
        %v499 = vpack.c.bf16 %v497, %v496
        %v500 = vld [vmem:[%s7] sm:$0xf]
        %v501 = vld [vmem:[%s7 + $0x4] sm:$0xf]
        %v502 = vld [vmem:[%s7 + $0x8] sm:$0xf]
        %v503 = vld [vmem:[%s7 + $0xc] sm:$0xf]
        %v504 = vld [vmem:[%s7 + $0x10] sm:$0xf]
        %v505 = vld [vmem:[%s7 + $0x14] sm:$0xf]
        %v506 = vld [vmem:[%s7 + $0x18] sm:$0xf]
        %v507 = vld [vmem:[%s7 + $0x1c] sm:$0xf]
        %v508 = vld [vmem:[%s8] sm:$0x1]
        %v510 = vperm.slane %v508, 0
        %v520 = vunpack.c.l.b16 %v500
        %v521 = vunpack.c.l.b16 %v501
        %v522 = vunpack.c.l.b16 %v502
        %v523 = vunpack.c.l.b16 %v503
        %v524 = vunpack.c.l.b16 %v504
        %v525 = vunpack.c.l.b16 %v505
        %v526 = vunpack.c.l.b16 %v506
        %v527 = vunpack.c.l.b16 %v507
        %v528 = vpack.c.b16 %v521, %v520
        %v529 = vpack.c.b16 %v523, %v522
        %v530 = vpack.c.b16 %v525, %v524
        %v531 = vpack.c.b16 %v527, %v526
        %vm536 = vcmask 523264
        %v538 = vsel %vm536, %v498, 0
        %v541 = vsel %vm536, %v499, 0
        %543 = vmatpush.bf16.msra.mxu0 0
        %544 = vmatpush.bf16.msra.mxu0 0
        %545 = vmatpush.bf16.msra.mxu0 0
        %546 = vmatpush.bf16.msra.mxu0 0
        %547 = vmatpush.bf16.msra.mxu0 %v531
        %548 = vmatpush.bf16.msra.mxu0 %v530
        %549 = vmatpush.bf16.msra.mxu0 %v529
        %550 = vmatpush.bf16.msra.mxu0 %v528
        %551 = vmatmul.bf16.gmra.mxu0 %v538
        %v552 = vpop.f32.mrf.mxu0
        %v553 = vadd.f32 %v510, %v552
        %v554 = vpop.f32.mrf.mxu0
        %v555 = vadd.f32 %v510, %v554
        %556 = vmatmul.bf16.gmra.mxu0 %v541
        %v557 = vpop.f32.mrf.mxu0
        %v558 = vadd.f32 %v510, %v557
        %v559 = vpop.f32.mrf.mxu0
        %v560 = vadd.f32 %v510, %v559
        %561 = vdwg.mxu0
        %562 = vst [vmem:[%s326] sm:$0xff] %v553
        %563 = vst [vmem:[%s326 + $0x8] sm:$0xff] %v555
        %564 = vst [vmem:[%s326 + $0x10] sm:$0xff] %v558
        %565 = vst [vmem:[%s326 + $0x18] sm:$0xff] %v560
        %s566 = sand.u32 %s225, 1
        %s567 = scalar_lea.sflag [#allocation3], %s566
        %s568 = sand.u32 %s225, 1
        %s569 = smul.addr %s568, 32
        %s570 = scalar_lea.vmem [#allocation2], %s569
        // Predicated region
        $region57: #{tpu_custom_call.1} parent=55 // pred_check
          %p571 = pneg %p235
        $region58: #{tpu_custom_call.1} parent=55 // pred_check_branch
          %573 = sbr.rel (%p571) target = $region60
        $region59: #{tpu_custom_call.1} parent=55 // pred_region
          %s574 = smul.u32 4, %s23
          %576 = vsyncadd %s567, 0
          %s577 = smul.addr %s574, 8
          %s578 = scalar_lea.hbm %s9, %s577
          %s579 = sshll.u32 %s570, 4
          %s580 = int_to_ptr.vmem [resolvable:$true] %s579
          %s581 = sshll.u32 %s578, 4
          %s582 = int_to_ptr.hbm [resolvable:$true] %s581
          %587 = dma.vmem_to_hbm [thread:$0]  %s580, 512, %s582, %s567, 128, 128, 8
        $region60: #{tpu_custom_call.1} parent=55 // pred_fallthru
          _
      $region56: #{tpu_custom_call.1} parent=5 // pred_fallthru
        _
      %p588 = scmp.le.s32.totalorder 2, %s18
      // Predicated region
      $region61: #{tpu_custom_call.1} parent=5 // pred_check
        %p589 = pneg %p588
      $region62: #{tpu_custom_call.1} parent=5 // pred_check_branch
        %591 = sbr.rel (%p589) target = $region64
      $region63: #{tpu_custom_call.1} parent=5 // pred_region
        %s592 = ssub.s32 %s18, 2
        // Predicated region
        $region65: #{tpu_custom_call.1} parent=63 // pred_check
          %p593 = pneg %p241
        $region66: #{tpu_custom_call.1} parent=63 // pred_check_branch
          %595 = sbr.rel (%p593) target = $region68
        $region67: #{tpu_custom_call.1} parent=63 // pred_region
          %s596 = sand.u32 %s226, 1
          %s597 = scalar_lea.sflag [#allocation3], %s596
          %s598 = sand.u32 %s226, 1
          %s599 = smul.addr %s598, 32
          %s600 = scalar_lea.vmem [#allocation2], %s599
          %602 = dma.done %s597, 512
        $region68: #{tpu_custom_call.1} parent=63 // pred_fallthru
          _
      $region64: #{tpu_custom_call.1} parent=5 // pred_fallthru
        _
    $region6: #{tpu_custom_call.1} parent=1 // loop_footer
      %s22 = sadd.s32 1, %s18
    $region7: #{tpu_custom_call.1} parent=1 // loop_footer_branch
      %17 = sbr.rel target = $region3
    $region8: #{tpu_custom_call.1} parent=1 // loop_exit
      _
    %603 = vsyncpa [#allocation3], 1
    %s604 = scalar_lea.sflag [#allocation3], 1
    %605 = vsyncpa %s604, 1

</llo_original>
